<compile_context>
chip_gen: v7x
topology: tpu7x:2x2x1
jax: 0.10.0
libtpu: 0.0.40
codegen_flags: <defaults>
</compile_context>

<pallas_src>
import jax
import jax.numpy as jnp
from jax.experimental import pallas as pl
from jax.experimental.pallas import tpu as pltpu

LATENT_DIM = 32
HIDDEN_DIM = 256
OUT_PAD = 128          # lane-dense padded output width (real output = LATENT_DIM)
MAX_TILE_B = 512       # batch tile ceiling (comfortably inside VMEM on v5e/v6e/v7x)


def _forward_kernel(state_ref, act_ref,
                    we1_ref, be1_ref, we2_ref, be2_ref, we34_ref, be34_ref,
                    wm1s_ref, wm1a_ref, bm1_ref,
                    wm2_ref, bm2_ref, wm3_ref, bm3_ref,
                    out_ref):
    f32 = jnp.float32
    bf16 = jnp.bfloat16

    # ---- state encoder (tiny matmuls, kept f32) ----
    x = state_ref[...].astype(f32)
    h = jnp.tanh(jnp.dot(x, we1_ref[...], preferred_element_type=f32) + be1_ref[...])
    h = jnp.tanh(jnp.dot(h, we2_ref[...], preferred_element_type=f32) + be2_ref[...])
    # folded Lin(L,L) @ Lin(L,L)  (no nonlinearity between them in the original module)
    s = jnp.dot(h, we34_ref[...], preferred_element_type=f32) + be34_ref[...]     # (TB, L)

    # ---- model: cat([s, a]) @ W1 as split matmul (MXU bf16 + VPU rank-1 update) ----
    a = act_ref[...].astype(f32)                                                  # (TB, 1)
    pre1 = (jnp.dot(s.astype(bf16), wm1s_ref[...], preferred_element_type=f32)
            + a * wm1a_ref[...]                                                   # (TB,1)*(1,256)
            + bm1_ref[...])
    h1 = jnp.tanh(pre1)                                                           # f32
    h2 = jnp.tanh(jnp.dot(h1.astype(bf16), wm2_ref[...], preferred_element_type=f32)
                  + bm2_ref[...])
    out_ref[...] = (jnp.dot(h2.astype(bf16), wm3_ref[...], preferred_element_type=f32)
                    + bm3_ref[...]).astype(out_ref.dtype)                         # (TB, 128)


def init_params(key, state_dim, latent_dim=LATENT_DIM, hidden_dim=HIDDEN_DIM):
    """PyTorch-Linear-like init: U(-1/sqrt(fan_in), 1/sqrt(fan_in)); weights stored (in,out)."""
    def lin(k, fan_in, fan_out):
        kw, kb = jax.random.split(k)
        bound = 1.0 / jnp.sqrt(jnp.float32(fan_in))
        w = jax.random.uniform(kw, (fan_in, fan_out), jnp.float32, -bound, bound)
        b = jax.random.uniform(kb, (1, fan_out), jnp.float32, -bound, bound)
        return w, b

    keys = jax.random.split(key, 7)
    we1, be1 = lin(keys[0], state_dim, latent_dim)
    we2, be2 = lin(keys[1], latent_dim, latent_dim)
    we3, be3 = lin(keys[2], latent_dim, latent_dim)
    we4, be4 = lin(keys[3], latent_dim, latent_dim)
    wm1, bm1 = lin(keys[4], latent_dim + 1, hidden_dim)
    wm2, bm2 = lin(keys[5], hidden_dim, hidden_dim)
    wm3, bm3 = lin(keys[6], hidden_dim, latent_dim)
    return (we1, be1, we2, be2, we3, be3, we4, be4, wm1, bm1, wm2, bm2, wm3, bm3)


def prepare_kernel_params(raw):
    """Fold the encoder tail, split the concat weight, cast model weights to bf16,
    zero-pad the final layer to a lane-dense 128-wide output."""
    (we1, be1, we2, be2, we3, be3, we4, be4, wm1, bm1, wm2, bm2, wm3, bm3) = raw
    bf16 = jnp.bfloat16

    we34 = we3 @ we4
    be34 = be3 @ we4 + be4

    wm1s = wm1[:LATENT_DIM, :].astype(bf16)       # (L, 256)   MXU operand
    wm1a = wm1[LATENT_DIM:, :]                    # (1, 256)   stays f32 (VPU outer product)

    wm3p = jnp.zeros((HIDDEN_DIM, OUT_PAD), jnp.float32).at[:, :LATENT_DIM].set(wm3)
    bm3p = jnp.zeros((1, OUT_PAD), jnp.float32).at[:, :LATENT_DIM].set(bm3)

    return (we1, be1, we2, be2, we34, be34,
            wm1s, wm1a, bm1,
            wm2.astype(bf16), bm2,
            wm3p.astype(bf16), bm3p)


@jax.jit
def forward_model(state, action, kernel_params):
    """state: (B, state_dim) f32, action: (B,) -> (B, LATENT_DIM) f32."""
    B, S = state.shape
    act2d = action.reshape(B, 1).astype(jnp.float32)

    # batch tiling: tile must be a multiple of 8; pad B up to a tile multiple
    tile_b = min(MAX_TILE_B, ((B + 7) // 8) * 8)
    num_tiles = pl.cdiv(B, tile_b)
    padded_b = num_tiles * tile_b
    if padded_b != B:
        state = jnp.pad(state, ((0, padded_b - B), (0, 0)))
        act2d = jnp.pad(act2d, ((0, padded_b - B), (0, 0)))

    def resident_spec(arr):
        # whole weight/bias stays in VMEM across all grid steps
        return pl.BlockSpec(arr.shape, lambda i: (0, 0))

    in_specs = (
        [pl.BlockSpec((tile_b, S), lambda i: (i, 0)),     # state tile
         pl.BlockSpec((tile_b, 1), lambda i: (i, 0))]     # action tile
        + [resident_spec(p) for p in kernel_params]
    )

    out_padded = pl.pallas_call(
        _forward_kernel,
        out_shape=jax.ShapeDtypeStruct((padded_b, OUT_PAD), jnp.float32),
        grid=(num_tiles,),
        in_specs=in_specs,
        out_specs=pl.BlockSpec((tile_b, OUT_PAD), lambda i: (i, 0)),
        compiler_params=pltpu.CompilerParams(
            dimension_semantics=("parallel",),        # megacore batch split on v7x
            vmem_limit_bytes=32 << 20,
        ),
    )(state, act2d, *kernel_params)

    return out_padded[:B, :LATENT_DIM]


def forward_model_ref(state, action, raw):
    """Pure-JAX reference mirroring the PyTorch forward exactly (concat path, all f32)."""
    (we1, be1, we2, be2, we3, be3, we4, be4, wm1, bm1, wm2, bm2, wm3, bm3) = raw
    h = jnp.tanh(state @ we1 + be1)
    h = jnp.tanh(h @ we2 + be2)
    h = h @ we3 + be3
    s = h @ we4 + be4
    sa = jnp.concatenate([s, action[:, None].astype(jnp.float32)], axis=1)
    h1 = jnp.tanh(sa @ wm1 + bm1)
    h2 = jnp.tanh(h1 @ wm2 + bm2)
    return h2 @ wm3 + bm3


if __name__ == "__main__":
    STATE_DIM = 16
    BATCH = 8

    key = jax.random.PRNGKey(0)
    k_state, k_act, k_params = jax.random.split(key, 3)

    state = jax.random.normal(k_state, (BATCH, STATE_DIM), jnp.float32)
    # discrete-action branch: per-sample scalar action (cast to float by the concat)
    action = jax.random.randint(k_act, (BATCH,), 0, 4).astype(jnp.float32)

    raw_params = init_params(k_params, STATE_DIM)
    kernel_params = prepare_kernel_params(raw_params)

    out = forward_model(state, action, kernel_params)
    out = jax.block_until_ready(out)

    ref = forward_model_ref(state, action, raw_params)
    assert out.shape == (BATCH, LATENT_DIM)
    # bf16 MXU operands (f32 accumulate) => loosen tolerance vs the pure-f32 reference
    assert jnp.allclose(out, ref, atol=5e-2, rtol=5e-2), "mismatch vs reference"

    print("KERNEL_OK")
</pallas_src>

<mosaic_0001>
module attributes {stable_mosaic.version = 11 : i64} {
  func.func @_forward_kernel(%arg0: i32, %arg1: memref<8x16xf32, #tpu.memory_space<vmem>>, %arg2: memref<8x1xf32, #tpu.memory_space<vmem>>, %arg3: memref<16x32xf32, #tpu.memory_space<vmem>>, %arg4: memref<1x32xf32, #tpu.memory_space<vmem>>, %arg5: memref<32x32xf32, #tpu.memory_space<vmem>>, %arg6: memref<1x32xf32, #tpu.memory_space<vmem>>, %arg7: memref<32x32xf32, #tpu.memory_space<vmem>>, %arg8: memref<1x32xf32, #tpu.memory_space<vmem>>, %arg9: memref<32x256xbf16, #tpu.memory_space<vmem>>, %arg10: memref<1x256xf32, #tpu.memory_space<vmem>>, %arg11: memref<1x256xf32, #tpu.memory_space<vmem>>, %arg12: memref<256x256xbf16, #tpu.memory_space<vmem>>, %arg13: memref<1x256xf32, #tpu.memory_space<vmem>>, %arg14: memref<256x128xbf16, #tpu.memory_space<vmem>>, %arg15: memref<1x128xf32, #tpu.memory_space<vmem>>, %arg16: memref<8x128xf32, #tpu.memory_space<vmem>>) attributes {dimension_semantics = [#tpu.dimension_semantics<parallel>], iteration_bounds = array<i64: 1>, scalar_prefetch = 0 : i64, scratch_operands = 0 : i64, tpu.core_type = #tpu.core_type<tc>, window_params = [{transform_indices = @transform_0, window_bounds = array<i64: 8, 16>}, {transform_indices = @transform_1, window_bounds = array<i64: 8, 1>}, {pipeline_mode = #tpu.pipeline_mode<synchronous>, transform_indices = @transform_2, window_bounds = array<i64: 16, 32>}, {pipeline_mode = #tpu.pipeline_mode<synchronous>, transform_indices = @transform_3, window_bounds = array<i64: 1, 32>}, {pipeline_mode = #tpu.pipeline_mode<synchronous>, transform_indices = @transform_4, window_bounds = array<i64: 32, 32>}, {pipeline_mode = #tpu.pipeline_mode<synchronous>, transform_indices = @transform_5, window_bounds = array<i64: 1, 32>}, {pipeline_mode = #tpu.pipeline_mode<synchronous>, transform_indices = @transform_6, window_bounds = array<i64: 32, 32>}, {pipeline_mode = #tpu.pipeline_mode<synchronous>, transform_indices = @transform_7, window_bounds = array<i64: 1, 32>}, {pipeline_mode = #tpu.pipeline_mode<synchronous>, transform_indices = @transform_8, window_bounds = array<i64: 32, 256>}, {pipeline_mode = #tpu.pipeline_mode<synchronous>, transform_indices = @transform_9, window_bounds = array<i64: 1, 256>}, {pipeline_mode = #tpu.pipeline_mode<synchronous>, transform_indices = @transform_10, window_bounds = array<i64: 1, 256>}, {pipeline_mode = #tpu.pipeline_mode<synchronous>, transform_indices = @transform_11, window_bounds = array<i64: 256, 256>}, {pipeline_mode = #tpu.pipeline_mode<synchronous>, transform_indices = @transform_12, window_bounds = array<i64: 1, 256>}, {pipeline_mode = #tpu.pipeline_mode<synchronous>, transform_indices = @transform_13, window_bounds = array<i64: 256, 128>}, {pipeline_mode = #tpu.pipeline_mode<synchronous>, transform_indices = @transform_14, window_bounds = array<i64: 1, 128>}, {transform_indices = @transform_15, window_bounds = array<i64: 8, 128>}]} {
    %c0 = arith.constant 0 : index
    %c0_0 = arith.constant 0 : index
    %0 = vector.load %arg1[%c0, %c0_0] : memref<8x16xf32, #tpu.memory_space<vmem>>, vector<8x16xf32>
    %c0_1 = arith.constant 0 : index
    %c0_2 = arith.constant 0 : index
    %1 = vector.load %arg3[%c0_1, %c0_2] : memref<16x32xf32, #tpu.memory_space<vmem>>, vector<16x32xf32>
    %cst = arith.constant dense<0.000000e+00> : vector<8x32xf32>
    %2 = tpu.matmul %0, %1, %cst {dimension_numbers = #tpu.dot_dimension_numbers<[1], [0], [0], [1], [0, 0, 1, 1], [], []>} : vector<8x16xf32>, vector<16x32xf32>, vector<8x32xf32> -> vector<8x32xf32>
    %c0_3 = arith.constant 0 : index
    %c0_4 = arith.constant 0 : index
    %3 = vector.load %arg4[%c0_3, %c0_4] : memref<1x32xf32, #tpu.memory_space<vmem>>, vector<1x32xf32>
    %4 = vector.broadcast %3 : vector<1x32xf32> to vector<8x32xf32>
    %5 = arith.addf %2, %4 : vector<8x32xf32>
    %6 = math.tanh %5 : vector<8x32xf32>
    %c0_5 = arith.constant 0 : index
    %c0_6 = arith.constant 0 : index
    %7 = vector.load %arg5[%c0_5, %c0_6] : memref<32x32xf32, #tpu.memory_space<vmem>>, vector<32x32xf32>
    %cst_7 = arith.constant dense<0.000000e+00> : vector<8x32xf32>
    %8 = tpu.matmul %6, %7, %cst_7 {dimension_numbers = #tpu.dot_dimension_numbers<[1], [0], [0], [1], [0, 0, 1, 1], [], []>} : vector<8x32xf32>, vector<32x32xf32>, vector<8x32xf32> -> vector<8x32xf32>
    %c0_8 = arith.constant 0 : index
    %c0_9 = arith.constant 0 : index
    %9 = vector.load %arg6[%c0_8, %c0_9] : memref<1x32xf32, #tpu.memory_space<vmem>>, vector<1x32xf32>
    %10 = vector.broadcast %9 : vector<1x32xf32> to vector<8x32xf32>
    %11 = arith.addf %8, %10 : vector<8x32xf32>
    %12 = math.tanh %11 : vector<8x32xf32>
    %c0_10 = arith.constant 0 : index
    %c0_11 = arith.constant 0 : index
    %13 = vector.load %arg7[%c0_10, %c0_11] : memref<32x32xf32, #tpu.memory_space<vmem>>, vector<32x32xf32>
    %cst_12 = arith.constant dense<0.000000e+00> : vector<8x32xf32>
    %14 = tpu.matmul %12, %13, %cst_12 {dimension_numbers = #tpu.dot_dimension_numbers<[1], [0], [0], [1], [0, 0, 1, 1], [], []>} : vector<8x32xf32>, vector<32x32xf32>, vector<8x32xf32> -> vector<8x32xf32>
    %c0_13 = arith.constant 0 : index
    %c0_14 = arith.constant 0 : index
    %15 = vector.load %arg8[%c0_13, %c0_14] : memref<1x32xf32, #tpu.memory_space<vmem>>, vector<1x32xf32>
    %16 = vector.broadcast %15 : vector<1x32xf32> to vector<8x32xf32>
    %17 = arith.addf %14, %16 : vector<8x32xf32>
    %c0_15 = arith.constant 0 : index
    %c0_16 = arith.constant 0 : index
    %18 = vector.load %arg2[%c0_15, %c0_16] : memref<8x1xf32, #tpu.memory_space<vmem>>, vector<8x1xf32>
    %19 = arith.truncf %17 : vector<8x32xf32> to vector<8x32xbf16>
    %c0_17 = arith.constant 0 : index
    %c0_18 = arith.constant 0 : index
    %20 = vector.load %arg9[%c0_17, %c0_18] : memref<32x256xbf16, #tpu.memory_space<vmem>>, vector<32x256xbf16>
    %cst_19 = arith.constant dense<0.000000e+00> : vector<8x256xf32>
    %21 = tpu.matmul %19, %20, %cst_19 {dimension_numbers = #tpu.dot_dimension_numbers<[1], [0], [0], [1], [0, 0, 1, 1], [], []>} : vector<8x32xbf16>, vector<32x256xbf16>, vector<8x256xf32> -> vector<8x256xf32>
    %c0_20 = arith.constant 0 : index
    %c0_21 = arith.constant 0 : index
    %22 = vector.load %arg10[%c0_20, %c0_21] : memref<1x256xf32, #tpu.memory_space<vmem>>, vector<1x256xf32>
    %23 = vector.broadcast %18 : vector<8x1xf32> to vector<8x256xf32>
    %24 = vector.broadcast %22 : vector<1x256xf32> to vector<8x256xf32>
    %25 = arith.mulf %23, %24 : vector<8x256xf32>
    %26 = arith.addf %21, %25 : vector<8x256xf32>
    %c0_22 = arith.constant 0 : index
    %c0_23 = arith.constant 0 : index
    %27 = vector.load %arg11[%c0_22, %c0_23] : memref<1x256xf32, #tpu.memory_space<vmem>>, vector<1x256xf32>
    %28 = vector.broadcast %27 : vector<1x256xf32> to vector<8x256xf32>
    %29 = arith.addf %26, %28 : vector<8x256xf32>
    %30 = math.tanh %29 : vector<8x256xf32>
    %31 = arith.truncf %30 : vector<8x256xf32> to vector<8x256xbf16>
    %c0_24 = arith.constant 0 : index
    %c0_25 = arith.constant 0 : index
    %32 = vector.load %arg12[%c0_24, %c0_25] : memref<256x256xbf16, #tpu.memory_space<vmem>>, vector<256x256xbf16>
    %cst_26 = arith.constant dense<0.000000e+00> : vector<8x256xf32>
    %33 = tpu.matmul %31, %32, %cst_26 {dimension_numbers = #tpu.dot_dimension_numbers<[1], [0], [0], [1], [0, 0, 1, 1], [], []>} : vector<8x256xbf16>, vector<256x256xbf16>, vector<8x256xf32> -> vector<8x256xf32>
    %c0_27 = arith.constant 0 : index
    %c0_28 = arith.constant 0 : index
    %34 = vector.load %arg13[%c0_27, %c0_28] : memref<1x256xf32, #tpu.memory_space<vmem>>, vector<1x256xf32>
    %35 = vector.broadcast %34 : vector<1x256xf32> to vector<8x256xf32>
    %36 = arith.addf %33, %35 : vector<8x256xf32>
    %37 = math.tanh %36 : vector<8x256xf32>
    %38 = arith.truncf %37 : vector<8x256xf32> to vector<8x256xbf16>
    %c0_29 = arith.constant 0 : index
    %c0_30 = arith.constant 0 : index
    %39 = vector.load %arg14[%c0_29, %c0_30] : memref<256x128xbf16, #tpu.memory_space<vmem>>, vector<256x128xbf16>
    %cst_31 = arith.constant dense<0.000000e+00> : vector<8x128xf32>
    %40 = tpu.matmul %38, %39, %cst_31 {dimension_numbers = #tpu.dot_dimension_numbers<[1], [0], [0], [1], [0, 0, 1, 1], [], []>} : vector<8x256xbf16>, vector<256x128xbf16>, vector<8x128xf32> -> vector<8x128xf32>
    %c0_32 = arith.constant 0 : index
    %c0_33 = arith.constant 0 : index
    %41 = vector.load %arg15[%c0_32, %c0_33] : memref<1x128xf32, #tpu.memory_space<vmem>>, vector<1x128xf32>
    %42 = vector.broadcast %41 : vector<1x128xf32> to vector<8x128xf32>
    %43 = arith.addf %40, %42 : vector<8x128xf32>
    %c0_34 = arith.constant 0 : index
    %c0_35 = arith.constant 0 : index
    %44 = vector.load %arg16[%c0_34, %c0_35] : memref<8x128xf32, #tpu.memory_space<vmem>>, vector<8x128xf32>
    tpu.vector_store %arg16[%c0_34, %c0_35], %43 {strides = array<i32>} : memref<8x128xf32, #tpu.memory_space<vmem>>, vector<8x128xf32>,
    return
  }
  func.func @transform_0(%arg0: i32) -> (i32, i32) {
    %c0_i32 = arith.constant 0 : i32
    %c0_i32_0 = arith.constant 0 : i32
    return %arg0, %c0_i32 : i32, i32
  }
  func.func @transform_1(%arg0: i32) -> (i32, i32) {
    %c0_i32 = arith.constant 0 : i32
    %c0_i32_0 = arith.constant 0 : i32
    return %arg0, %c0_i32 : i32, i32
  }
  func.func @transform_2(%arg0: i32) -> (i32, i32) {
    %c0_i32 = arith.constant 0 : i32
    %c0_i32_0 = arith.constant 0 : i32
    %c0_i32_1 = arith.constant 0 : i32
    return %c0_i32, %c0_i32_0 : i32, i32
  }
  func.func @transform_3(%arg0: i32) -> (i32, i32) {
    %c0_i32 = arith.constant 0 : i32
    %c0_i32_0 = arith.constant 0 : i32
    %c0_i32_1 = arith.constant 0 : i32
    return %c0_i32, %c0_i32_0 : i32, i32
  }
  func.func @transform_4(%arg0: i32) -> (i32, i32) {
    %c0_i32 = arith.constant 0 : i32
    %c0_i32_0 = arith.constant 0 : i32
    %c0_i32_1 = arith.constant 0 : i32
    return %c0_i32, %c0_i32_0 : i32, i32
  }
  func.func @transform_5(%arg0: i32) -> (i32, i32) {
    %c0_i32 = arith.constant 0 : i32
    %c0_i32_0 = arith.constant 0 : i32
    %c0_i32_1 = arith.constant 0 : i32
    return %c0_i32, %c0_i32_0 : i32, i32
  }
  func.func @transform_6(%arg0: i32) -> (i32, i32) {
    %c0_i32 = arith.constant 0 : i32
    %c0_i32_0 = arith.constant 0 : i32
    %c0_i32_1 = arith.constant 0 : i32
    return %c0_i32, %c0_i32_0 : i32, i32
  }
  func.func @transform_7(%arg0: i32) -> (i32, i32) {
    %c0_i32 = arith.constant 0 : i32
    %c0_i32_0 = arith.constant 0 : i32
    %c0_i32_1 = arith.constant 0 : i32
    return %c0_i32, %c0_i32_0 : i32, i32
  }
  func.func @transform_8(%arg0: i32) -> (i32, i32) {
    %c0_i32 = arith.constant 0 : i32
    %c0_i32_0 = arith.constant 0 : i32
    %c0_i32_1 = arith.constant 0 : i32
    return %c0_i32, %c0_i32_0 : i32, i32
  }
  func.func @transform_9(%arg0: i32) -> (i32, i32) {
    %c0_i32 = arith.constant 0 : i32
    %c0_i32_0 = arith.constant 0 : i32
    %c0_i32_1 = arith.constant 0 : i32
    return %c0_i32, %c0_i32_0 : i32, i32
  }
  func.func @transform_10(%arg0: i32) -> (i32, i32) {
    %c0_i32 = arith.constant 0 : i32
    %c0_i32_0 = arith.constant 0 : i32
    %c0_i32_1 = arith.constant 0 : i32
    return %c0_i32, %c0_i32_0 : i32, i32
  }
  func.func @transform_11(%arg0: i32) -> (i32, i32) {
    %c0_i32 = arith.constant 0 : i32
    %c0_i32_0 = arith.constant 0 : i32
    %c0_i32_1 = arith.constant 0 : i32
    return %c0_i32, %c0_i32_0 : i32, i32
  }
  func.func @transform_12(%arg0: i32) -> (i32, i32) {
    %c0_i32 = arith.constant 0 : i32
    %c0_i32_0 = arith.constant 0 : i32
    %c0_i32_1 = arith.constant 0 : i32
    return %c0_i32, %c0_i32_0 : i32, i32
  }
  func.func @transform_13(%arg0: i32) -> (i32, i32) {
    %c0_i32 = arith.constant 0 : i32
    %c0_i32_0 = arith.constant 0 : i32
    %c0_i32_1 = arith.constant 0 : i32
    return %c0_i32, %c0_i32_0 : i32, i32
  }
  func.func @transform_14(%arg0: i32) -> (i32, i32) {
    %c0_i32 = arith.constant 0 : i32
    %c0_i32_0 = arith.constant 0 : i32
    %c0_i32_1 = arith.constant 0 : i32
    return %c0_i32, %c0_i32_0 : i32, i32
  }
  func.func @transform_15(%arg0: i32) -> (i32, i32) {
    %c0_i32 = arith.constant 0 : i32
    %c0_i32_0 = arith.constant 0 : i32
    return %arg0, %c0_i32 : i32, i32
  }
}

</mosaic_0001>

<llo_original>
// kernel: forward_model.1
$region0: #{forward_model.1}
  #allocation0 [shape = 'u32[]', space=smem, size = 0x4, offset = 0x4, fixed_abs, tag = 'smem constant byte address 0x4 - core index']
  #allocation1 [shape = 'u32[144,128]{1,0:T(1,128)}', space=vmem, size = 0x12000, scoped, tag = 'internal scratch']
  %s0 = inlined_call_operand.hbm [shape: f32[8,16], index: 0, kind: input, shape index: {}]
  %s1 = inlined_call_operand.vmem [shape: f32[8,1], index: 1, kind: input, shape index: {}]
  %s2 = inlined_call_operand.hbm [shape: f32[16,32], index: 2, kind: input, shape index: {}]
  %s3 = inlined_call_operand.vmem [shape: f32[1,32], index: 3, kind: input, shape index: {}]
  %s4 = inlined_call_operand.hbm [shape: f32[32,32], index: 4, kind: input, shape index: {}]
  %s5 = inlined_call_operand.hbm [shape: f32[1,32], index: 5, kind: input, shape index: {}]
  %s6 = inlined_call_operand.vmem [shape: f32[32,32], index: 6, kind: input, shape index: {}]
  %s7 = inlined_call_operand.hbm [shape: f32[1,32], index: 7, kind: input, shape index: {}]
  %s8 = inlined_call_operand.hbm [shape: bf16[32,256], index: 8, kind: input, shape index: {}]
  %s9 = inlined_call_operand.vmem [shape: f32[1,256], index: 9, kind: input, shape index: {}]
  %s10 = inlined_call_operand.vmem [shape: f32[1,256], index: 10, kind: input, shape index: {}]
  %s11 = inlined_call_operand.hbm [shape: bf16[256,256], index: 11, kind: input, shape index: {}]
  %s12 = inlined_call_operand.vmem [shape: f32[1,256], index: 12, kind: input, shape index: {}]
  %s13 = inlined_call_operand.hbm [shape: bf16[256,128], index: 13, kind: input, shape index: {}]
  %s14 = inlined_call_operand.vmem [shape: f32[1,128], index: 14, kind: input, shape index: {}]
  %s15 = inlined_call_operand.hbm [shape: f32[8,128], index: 15, kind: output, shape index: {}]
  %s16 = sld [smem:[#allocation0]]
  $region102: #{forward_model.1} parent=0
    _
  %s18 = ssub.s32 1, %s16
  %s19 = scalar_select 0, %s18, %s16
  $region1: #{forward_model.1} parent=0
    #allocation2 [shape = 'u8[4096]{0}', space=vmem, size = 0x1000, scoped, tag = 'input window, operand 0, single buffered']
    #allocation3 [shape = 's32[1]{0}', space=sflag, size = 0x4, scoped, tag = 'scoped memory for forward_model.1']
    #allocation4 [shape = 's32[1]{0}', space=sflag, size = 0x4, scoped, tag = 'scoped memory for forward_model.1']
    #allocation5 [shape = 'u8[8192]{0}', space=vmem, size = 0x2000, scoped, tag = 'input window, operand 2, single buffered']
    #allocation6 [shape = 's32[1]{0}', space=sflag, size = 0x4, scoped, tag = 'scoped memory for forward_model.1']
    #allocation7 [shape = 'u8[16384]{0}', space=vmem, size = 0x4000, scoped, tag = 'input window, operand 4, single buffered']
    #allocation8 [shape = 'u8[512]{0}', space=vmem, size = 0x400, scoped, tag = 'input window, operand 5, single buffered']
    #allocation9 [shape = 's32[1]{0}', space=sflag, size = 0x4, scoped, tag = 'scoped memory for forward_model.1']
    #allocation10 [shape = 'u8[512]{0}', space=vmem, size = 0x400, scoped, tag = 'input window, operand 7, single buffered']
    #allocation11 [shape = 'u8[16384]{0}', space=vmem, size = 0x4000, scoped, tag = 'input window, operand 8, single buffered']
    #allocation12 [shape = 's32[1]{0}', space=sflag, size = 0x4, scoped, tag = 'scoped memory for forward_model.1']
    #allocation13 [shape = 'u8[131072]{0}', space=vmem, size = 0x20000, scoped, tag = 'input window, operand 11, single buffered']
    #allocation14 [shape = 'u8[65536]{0}', space=vmem, size = 0x10000, scoped, tag = 'input window, operand 13, single buffered']
    #allocation15 [shape = 's32[1]{0}', space=sflag, size = 0x4, scoped, tag = 'scoped memory for forward_model.1']
    #allocation16 [shape = 'u8[4096]{0}', space=vmem, size = 0x1000, scoped, tag = 'output window, operand 0, single buffered']
    %20 = vsyncpa [#allocation3], 0
    %21 = vsyncpa [#allocation6], 0
    %22 = vsyncpa [#allocation9], 0
    %23 = vsyncpa [#allocation12], 0
    %24 = vsyncpa [#allocation15], 0
    %25 = vsyncpa [#allocation4], 0
    // Predicated region
    $region2: #{forward_model.1} parent=1 // pred_check
      _
    $region3: #{forward_model.1} parent=1 // pred_check_branch
      %27 = sbr.rel (0) target = $region5
    $region4: #{forward_model.1} parent=1 // pred_region
      %s29 = ssub.s32 128, 128
      %30 = vsyncadd [#allocation3], %s29
      %s32 = sshll.u32 [#allocation2], 4
      %s33 = int_to_ptr.vmem [resolvable:$true] %s32
      %35 = dma.hbm_to_vmem [thread:$0]  %s0, 128, %s33, [#allocation3]
    $region5: #{forward_model.1} parent=1 // pred_fallthru
      _
    // Predicated region
    $region6: #{forward_model.1} parent=1 // pred_check
      _
    $region7: #{forward_model.1} parent=1 // pred_check_branch
      %37 = sbr.rel (0) target = $region9
    $region8: #{forward_model.1} parent=1 // pred_region
      _
    $region9: #{forward_model.1} parent=1 // pred_fallthru
      _
    // Predicated region
    $region10: #{forward_model.1} parent=1 // pred_check
      _
    $region11: #{forward_model.1} parent=1 // pred_check_branch
      %39 = sbr.rel (0) target = $region13
    $region12: #{forward_model.1} parent=1 // pred_region
      %s41 = ssub.s32 256, 256
      %42 = vsyncadd [#allocation6], %s41
      %s43 = sshll.u32 [#allocation5], 4
      %s44 = int_to_ptr.vmem [resolvable:$true] %s43
      %49 = dma.hbm_to_vmem [thread:$0]  %s2, 256, %s44, [#allocation6], 128, 128, 8
    $region13: #{forward_model.1} parent=1 // pred_fallthru
      _
    // Predicated region
    $region14: #{forward_model.1} parent=1 // pred_check
      _
    $region15: #{forward_model.1} parent=1 // pred_check_branch
      %51 = sbr.rel (0) target = $region17
    $region16: #{forward_model.1} parent=1 // pred_region
      _
    $region17: #{forward_model.1} parent=1 // pred_fallthru
      _
    // Predicated region
    $region18: #{forward_model.1} parent=1 // pred_check
      _
    $region19: #{forward_model.1} parent=1 // pred_check_branch
      %53 = sbr.rel (0) target = $region21
    $region20: #{forward_model.1} parent=1 // pred_region
      %s55 = ssub.s32 512, 512
      %56 = vsyncadd [#allocation6], %s55
      %s57 = sshll.u32 [#allocation7], 4
      %s58 = int_to_ptr.vmem [resolvable:$true] %s57
      %63 = dma.hbm_to_vmem [thread:$0]  %s4, 512, %s58, [#allocation6], 128, 128, 8
    $region21: #{forward_model.1} parent=1 // pred_fallthru
      _
    // Predicated region
    $region22: #{forward_model.1} parent=1 // pred_check
      _
    $region23: #{forward_model.1} parent=1 // pred_check_branch
      %65 = sbr.rel (0) target = $region25
    $region24: #{forward_model.1} parent=1 // pred_region
      %s67 = ssub.s32 16, 16
      %68 = vsyncadd [#allocation9], %s67
      %s70 = sshll.u32 [#allocation8], 4
      %s71 = int_to_ptr.vmem [resolvable:$true] %s70
      %73 = dma.hbm_to_vmem [thread:$0]  %s5, 16, %s71, [#allocation9]
    $region25: #{forward_model.1} parent=1 // pred_fallthru
      _
    // Predicated region
    $region26: #{forward_model.1} parent=1 // pred_check
      _
    $region27: #{forward_model.1} parent=1 // pred_check_branch
      %75 = sbr.rel (0) target = $region29
    $region28: #{forward_model.1} parent=1 // pred_region
      _
    $region29: #{forward_model.1} parent=1 // pred_fallthru
      _
    // Predicated region
    $region30: #{forward_model.1} parent=1 // pred_check
      _
    $region31: #{forward_model.1} parent=1 // pred_check_branch
      %77 = sbr.rel (0) target = $region33
    $region32: #{forward_model.1} parent=1 // pred_region
      %s79 = ssub.s32 16, 16
      %80 = vsyncadd [#allocation9], %s79
      %s82 = sshll.u32 [#allocation10], 4
      %s83 = int_to_ptr.vmem [resolvable:$true] %s82
      %85 = dma.hbm_to_vmem [thread:$0]  %s7, 16, %s83, [#allocation9]
    $region33: #{forward_model.1} parent=1 // pred_fallthru
      _
    // Predicated region
    $region34: #{forward_model.1} parent=1 // pred_check
      _
    $region35: #{forward_model.1} parent=1 // pred_check_branch
      %87 = sbr.rel (0) target = $region37
    $region36: #{forward_model.1} parent=1 // pred_region
      %s89 = ssub.s32 512, 512
      %90 = vsyncadd [#allocation12], %s89
      %s91 = sshll.u32 [#allocation11], 4
      %s92 = int_to_ptr.vmem [resolvable:$true] %s91
      %97 = dma.hbm_to_vmem [thread:$0]  %s8, 512, %s92, [#allocation12], 128, 128, 8
    $region37: #{forward_model.1} parent=1 // pred_fallthru
      _
    // Predicated region
    $region38: #{forward_model.1} parent=1 // pred_check
      _
    $region39: #{forward_model.1} parent=1 // pred_check_branch
      %99 = sbr.rel (0) target = $region41
    $region40: #{forward_model.1} parent=1 // pred_region
      _
    $region41: #{forward_model.1} parent=1 // pred_fallthru
      _
    // Predicated region
    $region42: #{forward_model.1} parent=1 // pred_check
      _
    $region43: #{forward_model.1} parent=1 // pred_check_branch
      %101 = sbr.rel (0) target = $region45
    $region44: #{forward_model.1} parent=1 // pred_region
      _
    $region45: #{forward_model.1} parent=1 // pred_fallthru
      _
    // Predicated region
    $region46: #{forward_model.1} parent=1 // pred_check
      _
    $region47: #{forward_model.1} parent=1 // pred_check_branch
      %103 = sbr.rel (0) target = $region49
    $region48: #{forward_model.1} parent=1 // pred_region
      %s105 = ssub.s32 4096, 4096
      %106 = vsyncadd [#allocation12], %s105
      %s107 = sshll.u32 [#allocation13], 4
      %s108 = int_to_ptr.vmem [resolvable:$true] %s107
      %113 = dma.hbm_to_vmem [thread:$0]  %s11, 4096, %s108, [#allocation12], 128, 128, 8
    $region49: #{forward_model.1} parent=1 // pred_fallthru
      _
    // Predicated region
    $region50: #{forward_model.1} parent=1 // pred_check
      _
    $region51: #{forward_model.1} parent=1 // pred_check_branch
      %115 = sbr.rel (0) target = $region53
    $region52: #{forward_model.1} parent=1 // pred_region
      _
    $region53: #{forward_model.1} parent=1 // pred_fallthru
      _
    // Predicated region
    $region54: #{forward_model.1} parent=1 // pred_check
      _
    $region55: #{forward_model.1} parent=1 // pred_check_branch
      %117 = sbr.rel (0) target = $region57
    $region56: #{forward_model.1} parent=1 // pred_region
      %s119 = ssub.s32 2048, 2048
      %120 = vsyncadd [#allocation15], %s119
      %s121 = sshll.u32 [#allocation14], 4
      %s122 = int_to_ptr.vmem [resolvable:$true] %s121
      %127 = dma.hbm_to_vmem [thread:$0]  %s13, 2048, %s122, [#allocation15], 64, 64, 4
    $region57: #{forward_model.1} parent=1 // pred_fallthru
      _
    // Predicated region
    $region58: #{forward_model.1} parent=1 // pred_check
      _
    $region59: #{forward_model.1} parent=1 // pred_check_branch
      %129 = sbr.rel (0) target = $region61
    $region60: #{forward_model.1} parent=1 // pred_region
      _
    $region61: #{forward_model.1} parent=1 // pred_fallthru
      _
    // Predicated region
    $region62: #{forward_model.1} parent=1 // pred_check
      _
    $region63: #{forward_model.1} parent=1 // pred_check_branch
      %131 = sbr.rel (0) target = $region65
    $region64: #{forward_model.1} parent=1 // pred_region
      %132 = dma.done [#allocation3], 128
    $region65: #{forward_model.1} parent=1 // pred_fallthru
      _
    // Predicated region
    $region66: #{forward_model.1} parent=1 // pred_check
      _
    $region67: #{forward_model.1} parent=1 // pred_check_branch
      %134 = sbr.rel (0) target = $region69
    $region68: #{forward_model.1} parent=1 // pred_region
      %135 = dma.done [#allocation6], 256
    $region69: #{forward_model.1} parent=1 // pred_fallthru
      _
    // Predicated region
    $region70: #{forward_model.1} parent=1 // pred_check
      _
    $region71: #{forward_model.1} parent=1 // pred_check_branch
      %137 = sbr.rel (0) target = $region73
    $region72: #{forward_model.1} parent=1 // pred_region
      %138 = dma.done [#allocation6], 512
    $region73: #{forward_model.1} parent=1 // pred_fallthru
      _
    // Predicated region
    $region74: #{forward_model.1} parent=1 // pred_check
      _
    $region75: #{forward_model.1} parent=1 // pred_check_branch
      %140 = sbr.rel (0) target = $region77
    $region76: #{forward_model.1} parent=1 // pred_region
      %141 = dma.done [#allocation9], 16
    $region77: #{forward_model.1} parent=1 // pred_fallthru
      _
    // Predicated region
    $region78: #{forward_model.1} parent=1 // pred_check
      _
    $region79: #{forward_model.1} parent=1 // pred_check_branch
      %143 = sbr.rel (0) target = $region81
    $region80: #{forward_model.1} parent=1 // pred_region
      %144 = dma.done [#allocation9], 16
    $region81: #{forward_model.1} parent=1 // pred_fallthru
      _
    // Predicated region
    $region82: #{forward_model.1} parent=1 // pred_check
      _
    $region83: #{forward_model.1} parent=1 // pred_check_branch
      %146 = sbr.rel (0) target = $region85
    $region84: #{forward_model.1} parent=1 // pred_region
      %147 = dma.done [#allocation12], 512
    $region85: #{forward_model.1} parent=1 // pred_fallthru
      _
    // Predicated region
    $region86: #{forward_model.1} parent=1 // pred_check
      _
    $region87: #{forward_model.1} parent=1 // pred_check_branch
      %149 = sbr.rel (0) target = $region89
    $region88: #{forward_model.1} parent=1 // pred_region
      %150 = dma.done [#allocation12], 4096
    $region89: #{forward_model.1} parent=1 // pred_fallthru
      _
    // Predicated region
    $region90: #{forward_model.1} parent=1 // pred_check
      _
    $region91: #{forward_model.1} parent=1 // pred_check_branch
      %152 = sbr.rel (0) target = $region93
    $region92: #{forward_model.1} parent=1 // pred_region
      %153 = dma.done [#allocation15], 2048
    $region93: #{forward_model.1} parent=1 // pred_fallthru
      _
    %v155 = vld [vmem:[#allocation2] sm:$0xff]
    %v156 = vld [vmem:[#allocation5] sm:$0xff]
    %v157 = vld [vmem:[#allocation5 + $0x8] sm:$0xff]
    %v158 = vld [vmem:[%s3] sm:$0x1]
    %v160 = vlaneseq
    %v161 = vshrl.u32 %v160, 7
    %v162 = vsub.s32 0, %v161
    %v163 = vrot.slane %v158, %v162
    %vm165 = vcmask 130048
    %v167 = vsel %vm165, %v155, 0
    %169 = vmatprep.subr.mxu0 0.0
    %170 = vmatpush1.msra.mxu0 %v156
    %171 = vmatprep.subr.mxu0 0.0
    %172 = vmatpush1.msra.mxu0 %v157
    %173 = vmatprep.subr.mxu0 0.0
    %174 = vmatpush1.msra.mxu0 0.0
    %175 = vmatprep.subr.mxu0 0.0
    %176 = vmatpush1.msra.mxu0 0.0
    %177 = vmatprep.subr.mxu0 0.0
    %178 = vmatpush1.msra.mxu0 0.0
    %179 = vmatprep.subr.mxu0 0.0
    %180 = vmatpush1.msra.mxu0 0.0
    %181 = vmatprep.subr.mxu0 0.0
    %182 = vmatpush1.msra.mxu0 0.0
    %183 = vmatprep.subr.mxu0 0.0
    %184 = vmatpush1.msra.mxu0 0.0
    %185 = vmatprep.subr.mxu0 0.0
    %186 = vmatpush1.msra.mxu0 0.0
    %187 = vmatprep.subr.mxu0 0.0
    %188 = vmatpush1.msra.mxu0 0.0
    %189 = vmatprep.subr.mxu0 0.0
    %190 = vmatpush1.msra.mxu0 0.0
    %191 = vmatprep.subr.mxu0 0.0
    %192 = vmatpush1.msra.mxu0 0.0
    %193 = vmatprep.subr.mxu0 0.0
    %194 = vmatpush1.msra.mxu0 0.0
    %195 = vmatprep.subr.mxu0 0.0
    %196 = vmatpush1.msra.mxu0 0.0
    %197 = vmatprep.subr.mxu0 0.0
    %198 = vmatpush1.msra.mxu0 0.0
    %199 = vmatprep.subr.mxu0 0.0
    %200 = vmatpush1.msra.mxu0 0.0
    %201 = vmatprep.subr.mxu0 0.0
    %202 = vmatpush1.msra.mxu0 0.0
    %203 = vmatprep.subr.mxu0 0.0
    %204 = vmatpush1.msra.mxu0 0.0
    %205 = vmatprep.subr.mxu0 0.0
    %206 = vmatpush1.msra.mxu0 0.0
    %207 = vmatprep.subr.mxu0 0.0
    %208 = vmatpush1.msra.mxu0 0.0
    %209 = vmatprep.subr.mxu0 0.0
    %210 = vmatpush1.msra.mxu0 0.0
    %211 = vmatprep.subr.mxu0 0.0
    %212 = vmatpush1.msra.mxu0 0.0
    %213 = vmatprep.subr.mxu0 0.0
    %214 = vmatpush1.msra.mxu0 0.0
    %215 = vmatprep.subr.mxu0 0.0
    %216 = vmatpush1.msra.mxu0 0.0
    %217 = vmatprep.subr.mxu0 0.0
    %218 = vmatpush1.msra.mxu0 0.0
    %219 = vmatprep.subr.mxu0 0.0
    %220 = vmatpush1.msra.mxu0 0.0
    %221 = vmatprep.subr.mxu0 0.0
    %222 = vmatpush1.msra.mxu0 0.0
    %223 = vmatprep.subr.mxu0 0.0
    %224 = vmatpush1.msra.mxu0 0.0
    %225 = vmatprep.subr.mxu0 0.0
    %226 = vmatpush1.msra.mxu0 0.0
    %227 = vmatprep.subr.mxu0 0.0
    %228 = vmatpush1.msra.mxu0 0.0
    %229 = vmatprep.subr.mxu0 0.0
    %230 = vmatpush1.msra.mxu0 0.0
    %231 = vmatprep.subr.mxu0 0.0
    %232 = vmatpush1.msra.mxu0 0.0
    %233 = vmatprep.mubr.f32.mxu0 0.0
    %234 = vmatmul.mubr.f32.gmra.mrb[0].mxu0 %v167
    %v235 = vpop.f32.mrb[0].mxu0
    %v236 = vadd.f32 %v163, %v235
    %v237 = vpop.f32.mrb[0].mxu0
    %238 = vdwg.mxu0
    %v239 = vtanh.pop %v236
    %v240 = vld [vmem:[#allocation7] sm:$0xff]
    %v241 = vld [vmem:[#allocation7 + $0x8] sm:$0xff]
    %v242 = vld [vmem:[#allocation7 + $0x10] sm:$0xff]
    %v243 = vld [vmem:[#allocation7 + $0x18] sm:$0xff]
    %v244 = vld [vmem:[#allocation8] sm:$0x1]
    %v246 = vlaneseq
    %v247 = vshrl.u32 %v246, 7
    %v248 = vsub.s32 0, %v247
    %v249 = vrot.slane %v244, %v248
    %vm251 = vcmask 261120
    %v253 = vsel %vm251, %v239, 0
    %255 = vmatprep.subr.mxu0 0.0
    %256 = vmatpush1.msra.mxu0 %v240
    %257 = vmatprep.subr.mxu0 0.0
    %258 = vmatpush1.msra.mxu0 %v241
    %259 = vmatprep.subr.mxu0 0.0
    %260 = vmatpush1.msra.mxu0 %v242
    %261 = vmatprep.subr.mxu0 0.0
    %262 = vmatpush1.msra.mxu0 %v243
    %263 = vmatprep.subr.mxu0 0.0
    %264 = vmatpush1.msra.mxu0 0.0
    %265 = vmatprep.subr.mxu0 0.0
    %266 = vmatpush1.msra.mxu0 0.0
    %267 = vmatprep.subr.mxu0 0.0
    %268 = vmatpush1.msra.mxu0 0.0
    %269 = vmatprep.subr.mxu0 0.0
    %270 = vmatpush1.msra.mxu0 0.0
    %271 = vmatprep.subr.mxu0 0.0
    %272 = vmatpush1.msra.mxu0 0.0
    %273 = vmatprep.subr.mxu0 0.0
    %274 = vmatpush1.msra.mxu0 0.0
    %275 = vmatprep.subr.mxu0 0.0
    %276 = vmatpush1.msra.mxu0 0.0
    %277 = vmatprep.subr.mxu0 0.0
    %278 = vmatpush1.msra.mxu0 0.0
    %279 = vmatprep.subr.mxu0 0.0
    %280 = vmatpush1.msra.mxu0 0.0
    %281 = vmatprep.subr.mxu0 0.0
    %282 = vmatpush1.msra.mxu0 0.0
    %283 = vmatprep.subr.mxu0 0.0
    %284 = vmatpush1.msra.mxu0 0.0
    %285 = vmatprep.subr.mxu0 0.0
    %286 = vmatpush1.msra.mxu0 0.0
    %287 = vmatprep.subr.mxu0 0.0
    %288 = vmatpush1.msra.mxu0 0.0
    %289 = vmatprep.subr.mxu0 0.0
    %290 = vmatpush1.msra.mxu0 0.0
    %291 = vmatprep.subr.mxu0 0.0
    %292 = vmatpush1.msra.mxu0 0.0
    %293 = vmatprep.subr.mxu0 0.0
    %294 = vmatpush1.msra.mxu0 0.0
    %295 = vmatprep.subr.mxu0 0.0
    %296 = vmatpush1.msra.mxu0 0.0
    %297 = vmatprep.subr.mxu0 0.0
    %298 = vmatpush1.msra.mxu0 0.0
    %299 = vmatprep.subr.mxu0 0.0
    %300 = vmatpush1.msra.mxu0 0.0
    %301 = vmatprep.subr.mxu0 0.0
    %302 = vmatpush1.msra.mxu0 0.0
    %303 = vmatprep.subr.mxu0 0.0
    %304 = vmatpush1.msra.mxu0 0.0
    %305 = vmatprep.subr.mxu0 0.0
    %306 = vmatpush1.msra.mxu0 0.0
    %307 = vmatprep.subr.mxu0 0.0
    %308 = vmatpush1.msra.mxu0 0.0
    %309 = vmatprep.subr.mxu0 0.0
    %310 = vmatpush1.msra.mxu0 0.0
    %311 = vmatprep.subr.mxu0 0.0
    %312 = vmatpush1.msra.mxu0 0.0
    %313 = vmatprep.subr.mxu0 0.0
    %314 = vmatpush1.msra.mxu0 0.0
    %315 = vmatprep.subr.mxu0 0.0
    %316 = vmatpush1.msra.mxu0 0.0
    %317 = vmatprep.subr.mxu0 0.0
    %318 = vmatpush1.msra.mxu0 0.0
    %319 = vmatprep.mubr.f32.mxu0 0.0
    %320 = vmatmul.mubr.f32.gmra.mrb[0].mxu0 %v253
    %v321 = vpop.f32.mrb[0].mxu0
    %v322 = vadd.f32 %v249, %v321
    %v323 = vpop.f32.mrb[0].mxu0
    %324 = vdwg.mxu0
    %v325 = vtanh.pop %v322
    %v326 = vld [vmem:[%s6] sm:$0xff]
    %v327 = vld [vmem:[%s6 + $0x8] sm:$0xff]
    %v328 = vld [vmem:[%s6 + $0x10] sm:$0xff]
    %v329 = vld [vmem:[%s6 + $0x18] sm:$0xff]
    %v330 = vld [vmem:[#allocation10] sm:$0x1]
    %v332 = vlaneseq
    %v333 = vshrl.u32 %v332, 7
    %v334 = vsub.s32 0, %v333
    %v335 = vrot.slane %v330, %v334
    %v338 = vsel %vm251, %v325, 0
    %340 = vmatprep.subr.mxu0 0.0
    %341 = vmatpush1.msra.mxu0 %v326
    %342 = vmatprep.subr.mxu0 0.0
    %343 = vmatpush1.msra.mxu0 %v327
    %344 = vmatprep.subr.mxu0 0.0
    %345 = vmatpush1.msra.mxu0 %v328
    %346 = vmatprep.subr.mxu0 0.0
    %347 = vmatpush1.msra.mxu0 %v329
    %348 = vmatprep.subr.mxu0 0.0
    %349 = vmatpush1.msra.mxu0 0.0
    %350 = vmatprep.subr.mxu0 0.0
    %351 = vmatpush1.msra.mxu0 0.0
    %352 = vmatprep.subr.mxu0 0.0
    %353 = vmatpush1.msra.mxu0 0.0
    %354 = vmatprep.subr.mxu0 0.0
    %355 = vmatpush1.msra.mxu0 0.0
    %356 = vmatprep.subr.mxu0 0.0
    %357 = vmatpush1.msra.mxu0 0.0
    %358 = vmatprep.subr.mxu0 0.0
    %359 = vmatpush1.msra.mxu0 0.0
    %360 = vmatprep.subr.mxu0 0.0
    %361 = vmatpush1.msra.mxu0 0.0
    %362 = vmatprep.subr.mxu0 0.0
    %363 = vmatpush1.msra.mxu0 0.0
    %364 = vmatprep.subr.mxu0 0.0
    %365 = vmatpush1.msra.mxu0 0.0
    %366 = vmatprep.subr.mxu0 0.0
    %367 = vmatpush1.msra.mxu0 0.0
    %368 = vmatprep.subr.mxu0 0.0
    %369 = vmatpush1.msra.mxu0 0.0
    %370 = vmatprep.subr.mxu0 0.0
    %371 = vmatpush1.msra.mxu0 0.0
    %372 = vmatprep.subr.mxu0 0.0
    %373 = vmatpush1.msra.mxu0 0.0
    %374 = vmatprep.subr.mxu0 0.0
    %375 = vmatpush1.msra.mxu0 0.0
    %376 = vmatprep.subr.mxu0 0.0
    %377 = vmatpush1.msra.mxu0 0.0
    %378 = vmatprep.subr.mxu0 0.0
    %379 = vmatpush1.msra.mxu0 0.0
    %380 = vmatprep.subr.mxu0 0.0
    %381 = vmatpush1.msra.mxu0 0.0
    %382 = vmatprep.subr.mxu0 0.0
    %383 = vmatpush1.msra.mxu0 0.0
    %384 = vmatprep.subr.mxu0 0.0
    %385 = vmatpush1.msra.mxu0 0.0
    %386 = vmatprep.subr.mxu0 0.0
    %387 = vmatpush1.msra.mxu0 0.0
    %388 = vmatprep.subr.mxu0 0.0
    %389 = vmatpush1.msra.mxu0 0.0
    %390 = vmatprep.subr.mxu0 0.0
    %391 = vmatpush1.msra.mxu0 0.0
    %392 = vmatprep.subr.mxu0 0.0
    %393 = vmatpush1.msra.mxu0 0.0
    %394 = vmatprep.subr.mxu0 0.0
    %395 = vmatpush1.msra.mxu0 0.0
    %396 = vmatprep.subr.mxu0 0.0
    %397 = vmatpush1.msra.mxu0 0.0
    %398 = vmatprep.subr.mxu0 0.0
    %399 = vmatpush1.msra.mxu0 0.0
    %400 = vmatprep.subr.mxu0 0.0
    %401 = vmatpush1.msra.mxu0 0.0
    %402 = vmatprep.subr.mxu0 0.0
    %403 = vmatpush1.msra.mxu0 0.0
    %404 = vmatprep.mubr.f32.mxu0 0.0
    %405 = vmatmul.mubr.f32.gmra.mrb[0].mxu0 %v338
    %v406 = vpop.f32.mrb[0].mxu0
    %v407 = vadd.f32 %v335, %v406
    %v408 = vpop.f32.mrb[0].mxu0
    %409 = vdwg.mxu0
    %v410 = vld [vmem:[%s1] sm:$0xff]
    %v411 = vpack.c.bf16 %v407, %v407
    %v412 = vld [vmem:[#allocation11] sm:$0xff]
    %v413 = vld [vmem:[#allocation11 + $0x8] sm:$0xff]
    %v414 = vld [vmem:[#allocation11 + $0x10] sm:$0xff]
    %v415 = vld [vmem:[#allocation11 + $0x18] sm:$0xff]
    %v416 = vld [vmem:[%s9] sm:$0x3]
    %418 = vset.pattern.permute.xlu0 0
    %419 = vperm.xlu0 %418, %v410
    %v420 = vpop.permute.xlu0 %419
    %v423 = vlaneseq
    %v424 = vshrl.u32 %v423, 7
    %v425 = vsub.s32 0, %v424
    %v426 = vrot.slane %v416, %v425
    %v427 = vlaneseq
    %v428 = vshrl.u32 %v427, 7
    %v429 = vsub.s32 1, %v428
    %v430 = vrot.slane %v416, %v429
    %v433 = vmul.f32 %v420, %v426
    %v434 = vmul.f32 %v420, %v430
    %v439 = vunpack.c.l.b16 %v412
    %v440 = vunpack.c.h.b16 %v412
    %v441 = vunpack.c.l.b16 %v413
    %v442 = vunpack.c.h.b16 %v413
    %v443 = vunpack.c.l.b16 %v414
    %v444 = vunpack.c.h.b16 %v414
    %v445 = vunpack.c.l.b16 %v415
    %v446 = vunpack.c.h.b16 %v415
    %v447 = vpack.c.b16 %v441, %v439
    %v448 = vpack.c.b16 %v442, %v440
    %v449 = vpack.c.b16 %v445, %v443
    %v450 = vpack.c.b16 %v446, %v444
    %v456 = vsel %vm251, %v411, 0
    %458 = vmatprep.subr.bf16.mxu0 %v448
    %459 = vmatpush1.bf16.msra.mxu0 %v447
    %460 = vmatprep.subr.bf16.mxu0 %v450
    %461 = vmatpush1.bf16.msra.mxu0 %v449
    %462 = vmatprep.subr.bf16.mxu0 0
    %463 = vmatpush1.bf16.msra.mxu0 0
    %464 = vmatprep.subr.bf16.mxu0 0
    %465 = vmatpush1.bf16.msra.mxu0 0
    %466 = vmatprep.subr.bf16.mxu0 0
    %467 = vmatpush1.bf16.msra.mxu0 0
    %468 = vmatprep.subr.bf16.mxu0 0
    %469 = vmatpush1.bf16.msra.mxu0 0
    %470 = vmatprep.subr.bf16.mxu0 0
    %471 = vmatpush1.bf16.msra.mxu0 0
    %472 = vmatprep.subr.bf16.mxu0 0
    %473 = vmatpush1.bf16.msra.mxu0 0
    %474 = vmatprep.subr.bf16.mxu0 0
    %475 = vmatpush1.bf16.msra.mxu0 0
    %476 = vmatprep.subr.bf16.mxu0 0
    %477 = vmatpush1.bf16.msra.mxu0 0
    %478 = vmatprep.subr.bf16.mxu0 0
    %479 = vmatpush1.bf16.msra.mxu0 0
    %480 = vmatprep.subr.bf16.mxu0 0
    %481 = vmatpush1.bf16.msra.mxu0 0
    %482 = vmatprep.subr.bf16.mxu0 0
    %483 = vmatpush1.bf16.msra.mxu0 0
    %484 = vmatprep.subr.bf16.mxu0 0
    %485 = vmatpush1.bf16.msra.mxu0 0
    %486 = vmatprep.subr.bf16.mxu0 0
    %487 = vmatpush1.bf16.msra.mxu0 0
    %488 = vmatprep.subr.bf16.mxu0 0
    %489 = vmatpush1.bf16.msra.mxu0 0
    %490 = vmatprep.mubr.bf16.mxu0 0
    %491 = vmatmul.mubr.bf16.gmra.mrb[0].mxu0 %v456
    %v492 = vpop.f32.mrb[0].mxu0
    %v493 = vadd.f32 %v433, %v492
    %v494 = vpop.f32.mrb[0].mxu0
    %v495 = vadd.f32 %v434, %v494
    %v496 = vpop.f32.mrb[0].mxu0
    %v497 = vpop.f32.mrb[0].mxu0
    %498 = vdwg.mxu0
    %v499 = vld [vmem:[%s10] sm:$0x3]
    %v501 = vlaneseq
    %v502 = vshrl.u32 %v501, 7
    %v503 = vsub.s32 0, %v502
    %v504 = vrot.slane %v499, %v503
    %v505 = vlaneseq
    %v506 = vshrl.u32 %v505, 7
    %v507 = vsub.s32 1, %v506
    %v508 = vrot.slane %v499, %v507
    %v511 = vadd.f32 %v493, %v504
    %v512 = vadd.f32 %v495, %v508
    %v513 = vtanh.pop %v511
    %v514 = vtanh.pop %v512
    %v515 = vpack.c.bf16 %v513, %v513
    %v516 = vpack.c.bf16 %v514, %v514
    %v517 = vld [vmem:[#allocation13] sm:$0xff]
    %v518 = vld [vmem:[#allocation13 + $0x8] sm:$0xff]
    %v519 = vld [vmem:[#allocation13 + $0x10] sm:$0xff]
    %v520 = vld [vmem:[#allocation13 + $0x18] sm:$0xff]
    %v521 = vld [vmem:[#allocation13 + $0x20] sm:$0xff]
    %v522 = vld [vmem:[#allocation13 + $0x28] sm:$0xff]
    %v523 = vld [vmem:[#allocation13 + $0x30] sm:$0xff]
    %v524 = vld [vmem:[#allocation13 + $0x38] sm:$0xff]
    %v525 = vld [vmem:[#allocation13 + $0x40] sm:$0xff]
    %v526 = vld [vmem:[#allocation13 + $0x48] sm:$0xff]
    %v527 = vld [vmem:[#allocation13 + $0x50] sm:$0xff]
    %v528 = vld [vmem:[#allocation13 + $0x58] sm:$0xff]
    %v529 = vld [vmem:[#allocation13 + $0x60] sm:$0xff]
    %v530 = vld [vmem:[#allocation13 + $0x68] sm:$0xff]
    %v531 = vld [vmem:[#allocation13 + $0x70] sm:$0xff]
    %v532 = vld [vmem:[#allocation13 + $0x78] sm:$0xff]
    %v533 = vld [vmem:[#allocation13 + $0x80] sm:$0xff]
    %v534 = vld [vmem:[#allocation13 + $0x88] sm:$0xff]
    %v535 = vld [vmem:[#allocation13 + $0x90] sm:$0xff]
    %v536 = vld [vmem:[#allocation13 + $0x98] sm:$0xff]
    %v537 = vld [vmem:[#allocation13 + $0xa0] sm:$0xff]
    %v538 = vld [vmem:[#allocation13 + $0xa8] sm:$0xff]
    %v539 = vld [vmem:[#allocation13 + $0xb0] sm:$0xff]
    %v540 = vld [vmem:[#allocation13 + $0xb8] sm:$0xff]
    %v541 = vld [vmem:[#allocation13 + $0xc0] sm:$0xff]
    %v542 = vld [vmem:[#allocation13 + $0xc8] sm:$0xff]
    %v543 = vld [vmem:[#allocation13 + $0xd0] sm:$0xff]
    %v544 = vld [vmem:[#allocation13 + $0xd8] sm:$0xff]
    %v545 = vld [vmem:[#allocation13 + $0xe0] sm:$0xff]
    %v546 = vld [vmem:[#allocation13 + $0xe8] sm:$0xff]
    %v547 = vld [vmem:[#allocation13 + $0xf0] sm:$0xff]
    %v548 = vld [vmem:[#allocation13 + $0xf8] sm:$0xff]
    %v549 = vld [vmem:[%s12] sm:$0x3]
    %v551 = vlaneseq
    %v552 = vshrl.u32 %v551, 7
    %v553 = vsub.s32 0, %v552
    %v554 = vrot.slane %v549, %v553
    %v555 = vlaneseq
    %v556 = vshrl.u32 %v555, 7
    %v557 = vsub.s32 1, %v556
    %v558 = vrot.slane %v549, %v557
    %v593 = vunpack.c.l.b16 %v517
    %v594 = vunpack.c.h.b16 %v517
    %v595 = vunpack.c.l.b16 %v518
    %v596 = vunpack.c.h.b16 %v518
    %v597 = vunpack.c.l.b16 %v519
    %v598 = vunpack.c.h.b16 %v519
    %v599 = vunpack.c.l.b16 %v520
    %v600 = vunpack.c.h.b16 %v520
    %v601 = vunpack.c.l.b16 %v521
    %v602 = vunpack.c.h.b16 %v521
    %v603 = vunpack.c.l.b16 %v522
    %v604 = vunpack.c.h.b16 %v522
    %v605 = vunpack.c.l.b16 %v523
    %v606 = vunpack.c.h.b16 %v523
    %v607 = vunpack.c.l.b16 %v524
    %v608 = vunpack.c.h.b16 %v524
    %v609 = vunpack.c.l.b16 %v525
    %v610 = vunpack.c.h.b16 %v525
    %v611 = vunpack.c.l.b16 %v526
    %v612 = vunpack.c.h.b16 %v526
    %v613 = vunpack.c.l.b16 %v527
    %v614 = vunpack.c.h.b16 %v527
    %v615 = vunpack.c.l.b16 %v528
    %v616 = vunpack.c.h.b16 %v528
    %v617 = vunpack.c.l.b16 %v529
    %v618 = vunpack.c.h.b16 %v529
    %v619 = vunpack.c.l.b16 %v530
    %v620 = vunpack.c.h.b16 %v530
    %v621 = vunpack.c.l.b16 %v531
    %v622 = vunpack.c.h.b16 %v531
    %v623 = vunpack.c.l.b16 %v532
    %v624 = vunpack.c.h.b16 %v532
    %v625 = vunpack.c.l.b16 %v533
    %v626 = vunpack.c.h.b16 %v533
    %v627 = vunpack.c.l.b16 %v534
    %v628 = vunpack.c.h.b16 %v534
    %v629 = vunpack.c.l.b16 %v535
    %v630 = vunpack.c.h.b16 %v535
    %v631 = vunpack.c.l.b16 %v536
    %v632 = vunpack.c.h.b16 %v536
    %v633 = vunpack.c.l.b16 %v537
    %v634 = vunpack.c.h.b16 %v537
    %v635 = vunpack.c.l.b16 %v538
    %v636 = vunpack.c.h.b16 %v538
    %v637 = vunpack.c.l.b16 %v539
    %v638 = vunpack.c.h.b16 %v539
    %v639 = vunpack.c.l.b16 %v540
    %v640 = vunpack.c.h.b16 %v540
    %v641 = vunpack.c.l.b16 %v541
    %v642 = vunpack.c.h.b16 %v541
    %v643 = vunpack.c.l.b16 %v542
    %v644 = vunpack.c.h.b16 %v542
    %v645 = vunpack.c.l.b16 %v543
    %v646 = vunpack.c.h.b16 %v543
    %v647 = vunpack.c.l.b16 %v544
    %v648 = vunpack.c.h.b16 %v544
    %v649 = vunpack.c.l.b16 %v545
    %v650 = vunpack.c.h.b16 %v545
    %v651 = vunpack.c.l.b16 %v546
    %v652 = vunpack.c.h.b16 %v546
    %v653 = vunpack.c.l.b16 %v547
    %v654 = vunpack.c.h.b16 %v547
    %v655 = vunpack.c.l.b16 %v548
    %v656 = vunpack.c.h.b16 %v548
    %v657 = vpack.c.b16 %v595, %v593
    %v658 = vpack.c.b16 %v596, %v594
    %v659 = vpack.c.b16 %v599, %v597
    %v660 = vpack.c.b16 %v600, %v598
    %v661 = vpack.c.b16 %v603, %v601
    %v662 = vpack.c.b16 %v604, %v602
    %v663 = vpack.c.b16 %v607, %v605
    %v664 = vpack.c.b16 %v608, %v606
    %v665 = vpack.c.b16 %v611, %v609
    %v666 = vpack.c.b16 %v612, %v610
    %v667 = vpack.c.b16 %v615, %v613
    %v668 = vpack.c.b16 %v616, %v614
    %v669 = vpack.c.b16 %v619, %v617
    %v670 = vpack.c.b16 %v620, %v618
    %v671 = vpack.c.b16 %v623, %v621
    %v672 = vpack.c.b16 %v624, %v622
    %v673 = vpack.c.b16 %v627, %v625
    %v674 = vpack.c.b16 %v628, %v626
    %v675 = vpack.c.b16 %v631, %v629
    %v676 = vpack.c.b16 %v632, %v630
    %v677 = vpack.c.b16 %v635, %v633
    %v678 = vpack.c.b16 %v636, %v634
    %v679 = vpack.c.b16 %v639, %v637
    %v680 = vpack.c.b16 %v640, %v638
    %v681 = vpack.c.b16 %v643, %v641
    %v682 = vpack.c.b16 %v644, %v642
    %v683 = vpack.c.b16 %v647, %v645
    %v684 = vpack.c.b16 %v648, %v646
    %v685 = vpack.c.b16 %v651, %v649
    %v686 = vpack.c.b16 %v652, %v650
    %v687 = vpack.c.b16 %v655, %v653
    %v688 = vpack.c.b16 %v656, %v654
    %721 = vmatprep.subr.bf16.mxu0 %v658
    %722 = vmatpush1.bf16.msra.mxu0 %v657
    %723 = vmatprep.subr.bf16.mxu0 %v660
    %724 = vmatpush1.bf16.msra.mxu0 %v659
    %725 = vmatprep.subr.bf16.mxu0 %v662
    %726 = vmatpush1.bf16.msra.mxu0 %v661
    %727 = vmatprep.subr.bf16.mxu0 %v664
    %728 = vmatpush1.bf16.msra.mxu0 %v663
    %729 = vmatprep.subr.bf16.mxu0 %v666
    %730 = vmatpush1.bf16.msra.mxu0 %v665
    %731 = vmatprep.subr.bf16.mxu0 %v668
    %732 = vmatpush1.bf16.msra.mxu0 %v667
    %733 = vmatprep.subr.bf16.mxu0 %v670
    %734 = vmatpush1.bf16.msra.mxu0 %v669
    %735 = vmatprep.subr.bf16.mxu0 %v672
    %736 = vmatpush1.bf16.msra.mxu0 %v671
    %737 = vmatprep.subr.bf16.mxu0 %v674
    %738 = vmatpush1.bf16.msra.mxu0 %v673
    %739 = vmatprep.subr.bf16.mxu0 %v676
    %740 = vmatpush1.bf16.msra.mxu0 %v675
    %741 = vmatprep.subr.bf16.mxu0 %v678
    %742 = vmatpush1.bf16.msra.mxu0 %v677
    %743 = vmatprep.subr.bf16.mxu0 %v680
    %744 = vmatpush1.bf16.msra.mxu0 %v679
    %745 = vmatprep.subr.bf16.mxu0 %v682
    %746 = vmatpush1.bf16.msra.mxu0 %v681
    %747 = vmatprep.subr.bf16.mxu0 %v684
    %748 = vmatpush1.bf16.msra.mxu0 %v683
    %749 = vmatprep.subr.bf16.mxu0 %v686
    %750 = vmatpush1.bf16.msra.mxu0 %v685
    %751 = vmatprep.subr.bf16.mxu0 %v688
    %752 = vmatpush1.bf16.msra.mxu0 %v687
    %753 = vmatprep.mubr.bf16.mxu0 %v516
    %754 = vmatmul.mubr.bf16.gmra.mrb[0].mxu0 %v515
    %v755 = vpop.f32.mrb[0].mxu0
    %v756 = vadd.f32 %v554, %v755
    %v757 = vpop.f32.mrb[0].mxu0
    %v758 = vadd.f32 %v558, %v757
    %v759 = vpop.f32.mrb[0].mxu0
    %v760 = vpop.f32.mrb[0].mxu0
    %761 = vdwg.mxu0
    %v762 = vtanh.pop %v756
    %v763 = vtanh.pop %v758
    %v764 = vpack.c.bf16 %v762, %v762
    %v765 = vpack.c.bf16 %v763, %v763
    %v766 = vld [vmem:[#allocation14] sm:$0xf]
    %v767 = vld [vmem:[#allocation14 + $0x4] sm:$0xf]
    %v768 = vld [vmem:[#allocation14 + $0x8] sm:$0xf]
    %v769 = vld [vmem:[#allocation14 + $0xc] sm:$0xf]
    %v770 = vld [vmem:[#allocation14 + $0x10] sm:$0xf]
    %v771 = vld [vmem:[#allocation14 + $0x14] sm:$0xf]
    %v772 = vld [vmem:[#allocation14 + $0x18] sm:$0xf]
    %v773 = vld [vmem:[#allocation14 + $0x1c] sm:$0xf]
    %v774 = vld [vmem:[#allocation14 + $0x20] sm:$0xf]
    %v775 = vld [vmem:[#allocation14 + $0x24] sm:$0xf]
    %v776 = vld [vmem:[#allocation14 + $0x28] sm:$0xf]
    %v777 = vld [vmem:[#allocation14 + $0x2c] sm:$0xf]
    %v778 = vld [vmem:[#allocation14 + $0x30] sm:$0xf]
    %v779 = vld [vmem:[#allocation14 + $0x34] sm:$0xf]
    %v780 = vld [vmem:[#allocation14 + $0x38] sm:$0xf]
    %v781 = vld [vmem:[#allocation14 + $0x3c] sm:$0xf]
    %v782 = vld [vmem:[#allocation14 + $0x40] sm:$0xf]
    %v783 = vld [vmem:[#allocation14 + $0x44] sm:$0xf]
    %v784 = vld [vmem:[#allocation14 + $0x48] sm:$0xf]
    %v785 = vld [vmem:[#allocation14 + $0x4c] sm:$0xf]
    %v786 = vld [vmem:[#allocation14 + $0x50] sm:$0xf]
    %v787 = vld [vmem:[#allocation14 + $0x54] sm:$0xf]
    %v788 = vld [vmem:[#allocation14 + $0x58] sm:$0xf]
    %v789 = vld [vmem:[#allocation14 + $0x5c] sm:$0xf]
    %v790 = vld [vmem:[#allocation14 + $0x60] sm:$0xf]
    %v791 = vld [vmem:[#allocation14 + $0x64] sm:$0xf]
    %v792 = vld [vmem:[#allocation14 + $0x68] sm:$0xf]
    %v793 = vld [vmem:[#allocation14 + $0x6c] sm:$0xf]
    %v794 = vld [vmem:[#allocation14 + $0x70] sm:$0xf]
    %v795 = vld [vmem:[#allocation14 + $0x74] sm:$0xf]
    %v796 = vld [vmem:[#allocation14 + $0x78] sm:$0xf]
    %v797 = vld [vmem:[#allocation14 + $0x7c] sm:$0xf]
    %v798 = vld [vmem:[%s14] sm:$0x1]
    %v800 = vlaneseq
    %v801 = vshrl.u32 %v800, 7
    %v802 = vsub.s32 0, %v801
    %v803 = vrot.slane %v798, %v802
    %v837 = vunpack.c.l.b16 %v766
    %v838 = vunpack.c.l.b16 %v767
    %v839 = vunpack.c.l.b16 %v768
    %v840 = vunpack.c.l.b16 %v769
    %v841 = vunpack.c.l.b16 %v770
    %v842 = vunpack.c.l.b16 %v771
    %v843 = vunpack.c.l.b16 %v772
    %v844 = vunpack.c.l.b16 %v773
    %v845 = vunpack.c.l.b16 %v774
    %v846 = vunpack.c.l.b16 %v775
    %v847 = vunpack.c.l.b16 %v776
    %v848 = vunpack.c.l.b16 %v777
    %v849 = vunpack.c.l.b16 %v778
    %v850 = vunpack.c.l.b16 %v779
    %v851 = vunpack.c.l.b16 %v780
    %v852 = vunpack.c.l.b16 %v781
    %v853 = vunpack.c.l.b16 %v782
    %v854 = vunpack.c.l.b16 %v783
    %v855 = vunpack.c.l.b16 %v784
    %v856 = vunpack.c.l.b16 %v785
    %v857 = vunpack.c.l.b16 %v786
    %v858 = vunpack.c.l.b16 %v787
    %v859 = vunpack.c.l.b16 %v788
    %v860 = vunpack.c.l.b16 %v789
    %v861 = vunpack.c.l.b16 %v790
    %v862 = vunpack.c.l.b16 %v791
    %v863 = vunpack.c.l.b16 %v792
    %v864 = vunpack.c.l.b16 %v793
    %v865 = vunpack.c.l.b16 %v794
    %v866 = vunpack.c.l.b16 %v795
    %v867 = vunpack.c.l.b16 %v796
    %v868 = vunpack.c.l.b16 %v797
    %v869 = vpack.c.b16 %v838, %v837
    %v870 = vpack.c.b16 %v840, %v839
    %v871 = vpack.c.b16 %v842, %v841
    %v872 = vpack.c.b16 %v844, %v843
    %v873 = vpack.c.b16 %v846, %v845
    %v874 = vpack.c.b16 %v848, %v847
    %v875 = vpack.c.b16 %v850, %v849
    %v876 = vpack.c.b16 %v852, %v851
    %v877 = vpack.c.b16 %v854, %v853
    %v878 = vpack.c.b16 %v856, %v855
    %v879 = vpack.c.b16 %v858, %v857
    %v880 = vpack.c.b16 %v860, %v859
    %v881 = vpack.c.b16 %v862, %v861
    %v882 = vpack.c.b16 %v864, %v863
    %v883 = vpack.c.b16 %v866, %v865
    %v884 = vpack.c.b16 %v868, %v867
    %901 = vmatprep.subr.bf16.mxu0 0
    %902 = vmatpush1.bf16.msra.mxu0 %v869
    %903 = vmatprep.subr.bf16.mxu0 0
    %904 = vmatpush1.bf16.msra.mxu0 %v870
    %905 = vmatprep.subr.bf16.mxu0 0
    %906 = vmatpush1.bf16.msra.mxu0 %v871
    %907 = vmatprep.subr.bf16.mxu0 0
    %908 = vmatpush1.bf16.msra.mxu0 %v872
    %909 = vmatprep.subr.bf16.mxu0 0
    %910 = vmatpush1.bf16.msra.mxu0 %v873
    %911 = vmatprep.subr.bf16.mxu0 0
    %912 = vmatpush1.bf16.msra.mxu0 %v874
    %913 = vmatprep.subr.bf16.mxu0 0
    %914 = vmatpush1.bf16.msra.mxu0 %v875
    %915 = vmatprep.subr.bf16.mxu0 0
    %916 = vmatpush1.bf16.msra.mxu0 %v876
    %917 = vmatprep.subr.bf16.mxu0 0
    %918 = vmatpush1.bf16.msra.mxu0 %v877
    %919 = vmatprep.subr.bf16.mxu0 0
    %920 = vmatpush1.bf16.msra.mxu0 %v878
    %921 = vmatprep.subr.bf16.mxu0 0
    %922 = vmatpush1.bf16.msra.mxu0 %v879
    %923 = vmatprep.subr.bf16.mxu0 0
    %924 = vmatpush1.bf16.msra.mxu0 %v880
    %925 = vmatprep.subr.bf16.mxu0 0
    %926 = vmatpush1.bf16.msra.mxu0 %v881
    %927 = vmatprep.subr.bf16.mxu0 0
    %928 = vmatpush1.bf16.msra.mxu0 %v882
    %929 = vmatprep.subr.bf16.mxu0 0
    %930 = vmatpush1.bf16.msra.mxu0 %v883
    %931 = vmatprep.subr.bf16.mxu0 0
    %932 = vmatpush1.bf16.msra.mxu0 %v884
    %933 = vmatprep.mubr.bf16.mxu0 %v765
    %934 = vmatmul.mubr.bf16.gmra.mrb[0].mxu0 %v764
    %v935 = vpop.f32.mrb[0].mxu0
    %v936 = vadd.f32 %v803, %v935
    %v937 = vpop.f32.mrb[0].mxu0
    %v938 = vpop.f32.mrb[0].mxu0
    %v939 = vpop.f32.mrb[0].mxu0
    %940 = vdwg.mxu0
    %941 = vst [vmem:[#allocation16] sm:$0xff] %v936
    // Predicated region
    $region94: #{forward_model.1} parent=1 // pred_check
      _
    $region95: #{forward_model.1} parent=1 // pred_check_branch
      %943 = sbr.rel (0) target = $region97
    $region96: #{forward_model.1} parent=1 // pred_region
      %s945 = ssub.s32 128, 128
      %946 = vsyncadd [#allocation4], %s945
      %s948 = sshll.u32 [#allocation16], 4
      %s949 = int_to_ptr.vmem [resolvable:$true] %s948
      %951 = dma.vmem_to_hbm [thread:$0]  %s949, 128, %s15, [#allocation4]
    $region97: #{forward_model.1} parent=1 // pred_fallthru
      _
    // Predicated region
    $region98: #{forward_model.1} parent=1 // pred_check
      _
    $region99: #{forward_model.1} parent=1 // pred_check_branch
      %953 = sbr.rel (0) target = $region101
    $region100: #{forward_model.1} parent=1 // pred_region
      %954 = dma.done [#allocation4], 128
    $region101: #{forward_model.1} parent=1 // pred_fallthru
      _
    %955 = vsyncpa [#allocation3], 1
    %956 = vsyncpa [#allocation6], 1
    %957 = vsyncpa [#allocation9], 1
    %958 = vsyncpa [#allocation12], 1
    %959 = vsyncpa [#allocation15], 1
    %960 = vsyncpa [#allocation4], 1

</llo_original>
